<compile_context>
chip_gen: v6e
topology: v6e:2x2x1
jax: 0.10.0
libtpu: 0.0.40
codegen_flags: <defaults>
</compile_context>

<pallas_src>
import jax
import jax.numpy as jnp
from jax.experimental import pallas as pl
from jax.experimental.pallas import tpu as pltpu


def _sublane_multiple(dtype):
    # Native sublane tile is 8 rows of 32-bit; packed dtypes need more rows.
    return max(1, (8 * 4) // jnp.dtype(dtype).itemsize)


# ---------------------------------------------------------------------------
# Fused kernel: per-image meta-net bias + ctx shift + prompt assembly
# ---------------------------------------------------------------------------
def _prompt_kernel(im_ref, w1_ref, b1_ref, w2_ref, b2_ref, ctx_ref,
                   prefix_ref, suffix_ref, out_ref):
    # im_ref     : (B, vis_dim)             resident (constant index_map)
    # w1_ref     : (vis_dim, hidden)        resident
    # b1_ref     : (1, hidden)              resident
    # w2_ref     : (hidden, ctx_dim)        resident
    # b2_ref     : (1, ctx_dim)             resident
    # ctx_ref    : (n_ctx, ctx_dim)         resident
    # prefix_ref : (TILE_NCLS, 1, D)        reused across the batch grid axis
    # suffix_ref : (TILE_NCLS, suf_len, D)  reused across the batch grid axis
    # out_ref    : (TILE_NCLS, seq_len, D)  (batch dim squeezed by BlockSpec)
    b = pl.program_id(1)
    tile_cls, seq_len, dim = out_ref.shape
    n_ctx = ctx_ref.shape[0]
    suf_len = suffix_ref.shape[1]
    out_dtype = out_ref.dtype

    # --- meta_net bias for image `b`: Linear -> ReLU -> Linear (f32 accum) ---
    # Tiny; fully hidden under the store-bound output DMA, parallel-safe
    # (no cross-step state / scratch).
    im_row = im_ref[pl.ds(b, 1), :].astype(jnp.float32)                  # (1, vis)
    h = jnp.dot(im_row, w1_ref[...].astype(jnp.float32),
                preferred_element_type=jnp.float32)
    h = jnp.maximum(h + b1_ref[...].astype(jnp.float32), 0.0)            # (1, hid)
    bias = jnp.dot(h, w2_ref[...].astype(jnp.float32),
                   preferred_element_type=jnp.float32)
    bias = bias + b2_ref[...].astype(jnp.float32)                        # (1, D)

    # ctx_shifted_b; cast to the output dtype BEFORE the class-tile broadcast.
    ctx_shift = (ctx_ref[...].astype(jnp.float32) + bias).astype(out_dtype)
    ctx_tile = jnp.broadcast_to(ctx_shift[None, :, :], (tile_cls, n_ctx, dim))

    # --- assembly with sublane-aligned stores --------------------------------
    sub = _sublane_multiple(out_dtype)
    head_rows = 1 + n_ctx
    head_len = min(seq_len, ((head_rows + sub - 1) // sub) * sub)        # static
    lead_suf = head_len - head_rows                                      # static

    parts = [prefix_ref[...].astype(out_dtype), ctx_tile]
    if lead_suf > 0:
        parts.append(suffix_ref[:, 0:lead_suf, :].astype(out_dtype))
    out_ref[:, 0:head_len, :] = jnp.concatenate(parts, axis=1)
    if head_len < seq_len:
        out_ref[:, head_len:seq_len, :] = (
            suffix_ref[:, lead_suf:suf_len, :].astype(out_dtype))


def _pick_class_tile(n_cls, seq_len, suf_len, ctx_dim, itemsize, budget_bytes):
    # Bytes per class per grid step: output row + prefix + suffix blocks,
    # each double-buffered by the pipeline (hence the factor of 2).
    per_cls = (seq_len + 1 + suf_len) * ctx_dim * itemsize
    tile = int(budget_bytes // (2 * per_cls))
    return max(1, min(n_cls, tile))


def prompt_learner_forward(im_features, w1, b1, w2, b2, ctx, prefix, suffix,
                           *, tile_cls=None):
    """prompts[b, c] = concat([prefix[c], ctx + meta_net(im_features[b]), suffix[c]])."""
    B, _ = im_features.shape
    n_ctx, ctx_dim = ctx.shape
    n_cls = prefix.shape[0]
    suf_len = suffix.shape[1]
    seq_len = 1 + n_ctx + suf_len
    out_dtype = prefix.dtype
    itemsize = jnp.dtype(out_dtype).itemsize

    # Generation-aware budgets: v5e/v6e have 128 MiB VMEM/core, v7x only 64 MiB.
    try:
        info = pltpu.get_tpu_info()
        vmem_cap = getattr(info, "vmem_capacity_bytes", 64 << 20)
    except Exception:
        vmem_cap = 64 << 20                      # conservative (v7x-safe) fallback
    if vmem_cap >= (100 << 20):                  # v5e / v6e
        block_budget = 56 << 20
        vmem_limit = 96 << 20
    else:                                        # v7x or unknown: keep >=16 MiB headroom
        block_budget = 22 << 20
        vmem_limit = 48 << 20

    if tile_cls is None:
        tile_cls = _pick_class_tile(n_cls, seq_len, suf_len, ctx_dim,
                                    itemsize, block_budget)
    tile_cls = max(1, min(int(tile_cls), n_cls))

    # No divisibility requirement: ragged last class tile handled by Pallas
    # (out-of-bounds output rows are not written back).
    grid = (pl.cdiv(n_cls, tile_cls), B)   # batch innermost -> prefix/suffix DMA reuse

    def _resident(shape):
        nd = len(shape)
        return pl.BlockSpec(shape, lambda c, b, _nd=nd: (0,) * _nd)

    out_shape = jax.ShapeDtypeStruct((B, n_cls, seq_len, ctx_dim), out_dtype)

    return pl.pallas_call(
        _prompt_kernel,
        out_shape=out_shape,
        grid=grid,
        in_specs=[
            _resident(im_features.shape),
            _resident(w1.shape),
            _resident(b1.shape),
            _resident(w2.shape),
            _resident(b2.shape),
            _resident(ctx.shape),
            # prefix/suffix ignore the innermost batch axis -> DMA reused across B.
            pl.BlockSpec((tile_cls, 1, ctx_dim), lambda c, b: (c, 0, 0)),
            pl.BlockSpec((tile_cls, suf_len, ctx_dim), lambda c, b: (c, 0, 0)),
        ],
        out_specs=pl.BlockSpec((None, tile_cls, seq_len, ctx_dim),
                               lambda c, b: (b, c, 0, 0)),
        compiler_params=pltpu.CompilerParams(
            dimension_semantics=("parallel", "parallel"),
            vmem_limit_bytes=vmem_limit,
        ),
    )(im_features, w1, b1, w2, b2, ctx, prefix, suffix)


# ---------------------------------------------------------------------------
# Pure-JAX reference mirroring the PyTorch forward (f32 math).
# ---------------------------------------------------------------------------
def _reference_forward(im_features, w1, b1, w2, b2, ctx, prefix, suffix):
    f32 = jnp.float32
    hp = jax.lax.Precision.HIGHEST
    h = jnp.maximum(
        jnp.dot(im_features.astype(f32), w1.astype(f32), precision=hp)
        + b1.astype(f32), 0.0)
    bias = jnp.dot(h, w2.astype(f32), precision=hp) + b2.astype(f32)     # (B, D)
    ctx_shifted = ctx.astype(f32)[None, :, :] + bias[:, None, :]         # (B, n_ctx, D)
    B = im_features.shape[0]
    n_cls = prefix.shape[0]
    ctx_b = jnp.broadcast_to(ctx_shifted[:, None, :, :], (B, n_cls) + ctx.shape)
    pre = jnp.broadcast_to(prefix.astype(f32)[None], (B,) + prefix.shape)
    suf = jnp.broadcast_to(suffix.astype(f32)[None], (B,) + suffix.shape)
    return jnp.concatenate([pre, ctx_b, suf], axis=2)


if __name__ == "__main__":
    # Small deterministic configuration mirroring the module's __init__ shapes.
    B = 2
    vis_dim = 64
    hidden = vis_dim // 16          # 4
    ctx_dim = 128
    n_ctx = 4
    n_cls = 6
    seq_len = 16
    suf_len = seq_len - 1 - n_ctx   # 11

    key = jax.random.PRNGKey(0)
    k_im, k_w1, k_b1, k_w2, k_b2, k_ctx, k_pre, k_suf = jax.random.split(key, 8)

    im_features = jax.random.normal(k_im, (B, vis_dim), dtype=jnp.float32)

    # meta_net parameters (deterministic synthetic init)
    w1 = 0.02 * jax.random.normal(k_w1, (vis_dim, hidden), dtype=jnp.float32)
    b1 = 0.02 * jax.random.normal(k_b1, (1, hidden), dtype=jnp.float32)
    w2 = 0.02 * jax.random.normal(k_w2, (hidden, ctx_dim), dtype=jnp.float32)
    b2 = 0.02 * jax.random.normal(k_b2, (1, ctx_dim), dtype=jnp.float32)

    # ctx vectors ~ N(0, 0.02), as in nn.init.normal_(ctx_vectors, std=0.02)
    ctx = 0.02 * jax.random.normal(k_ctx, (n_ctx, ctx_dim), dtype=jnp.float32)

    # token_prefix / token_suffix stand-ins.
    # TODO(synk): real module fills these from clip_model.token_embedding(tokenized prompts).
    prefix = jax.random.normal(k_pre, (n_cls, 1, ctx_dim), dtype=jnp.float32)
    suffix = jax.random.normal(k_suf, (n_cls, suf_len, ctx_dim), dtype=jnp.float32)

    ref = _reference_forward(im_features, w1, b1, w2, b2, ctx, prefix, suffix)

    # 1) f32, automatically chosen class tile.
    out = prompt_learner_forward(im_features, w1, b1, w2, b2, ctx, prefix, suffix)
    out = jax.block_until_ready(out)
    assert out.shape == (B, n_cls, seq_len, ctx_dim), out.shape
    assert jnp.allclose(out.astype(jnp.float32), ref, atol=1e-3, rtol=1e-3), \
        "f32 mismatch vs reference"

    # 2) f32, forced small tile -> exercises the ragged (non-dividing) last class tile.
    out_rag = prompt_learner_forward(im_features, w1, b1, w2, b2, ctx, prefix,
                                     suffix, tile_cls=4)
    out_rag = jax.block_until_ready(out_rag)
    assert jnp.allclose(out_rag.astype(jnp.float32), ref, atol=1e-3, rtol=1e-3), \
        "ragged-tile mismatch vs reference"

    # 3) bf16 end-to-end (halves HBM write traffic; assembly is write-bound).
    bf = jnp.bfloat16
    args_bf = [a.astype(bf) for a in
               (im_features, w1, b1, w2, b2, ctx, prefix, suffix)]
    out_bf = prompt_learner_forward(*args_bf)
    out_bf = jax.block_until_ready(out_bf)
    assert out_bf.dtype == bf
    ref_bf = _reference_forward(*args_bf)
    assert jnp.allclose(out_bf.astype(jnp.float32), ref_bf, atol=2e-2, rtol=2e-2), \
        "bf16 mismatch vs reference"

    print("KERNEL_OK")
</pallas_src>

<mosaic_0001>
module attributes {stable_mosaic.version = 11 : i64} {
  func.func @_prompt_kernel(%arg0: i32, %arg1: i32, %arg2: memref<2x64xf32, #tpu.memory_space<vmem>>, %arg3: memref<64x4xf32, #tpu.memory_space<vmem>>, %arg4: memref<1x4xf32, #tpu.memory_space<vmem>>, %arg5: memref<4x128xf32, #tpu.memory_space<vmem>>, %arg6: memref<1x128xf32, #tpu.memory_space<vmem>>, %arg7: memref<4x128xf32, #tpu.memory_space<vmem>>, %arg8: memref<6x1x128xf32, #tpu.memory_space<vmem>>, %arg9: memref<6x11x128xf32, #tpu.memory_space<vmem>>, %arg10: memref<1x6x16x128xf32, #tpu.memory_space<vmem>>) attributes {dimension_semantics = [#tpu.dimension_semantics<parallel>, #tpu.dimension_semantics<parallel>], iteration_bounds = array<i64: 1, 2>, scalar_prefetch = 0 : i64, scratch_operands = 0 : i64, tpu.core_type = #tpu.core_type<tc>, window_params = [{pipeline_mode = #tpu.pipeline_mode<synchronous>, transform_indices = @transform_0, window_bounds = array<i64: 2, 64>}, {pipeline_mode = #tpu.pipeline_mode<synchronous>, transform_indices = @transform_1, window_bounds = array<i64: 64, 4>}, {pipeline_mode = #tpu.pipeline_mode<synchronous>, transform_indices = @transform_2, window_bounds = array<i64: 1, 4>}, {pipeline_mode = #tpu.pipeline_mode<synchronous>, transform_indices = @transform_3, window_bounds = array<i64: 4, 128>}, {pipeline_mode = #tpu.pipeline_mode<synchronous>, transform_indices = @transform_4, window_bounds = array<i64: 1, 128>}, {pipeline_mode = #tpu.pipeline_mode<synchronous>, transform_indices = @transform_5, window_bounds = array<i64: 4, 128>}, {transform_indices = @transform_6, window_bounds = array<i64: 6, 1, 128>}, {transform_indices = @transform_7, window_bounds = array<i64: 6, 11, 128>}, {transform_indices = @transform_8, window_bounds = array<i64: 1, 6, 16, 128>}]} {
    %0 = arith.index_cast %arg1 : i32 to index
    %c0 = arith.constant 0 : index
    %1 = vector.load %arg2[%0, %c0] : memref<2x64xf32, #tpu.memory_space<vmem>>, vector<1x64xf32>
    %c0_0 = arith.constant 0 : index
    %c0_1 = arith.constant 0 : index
    %2 = vector.load %arg3[%c0_0, %c0_1] : memref<64x4xf32, #tpu.memory_space<vmem>>, vector<64x4xf32>
    %cst = arith.constant dense<0.000000e+00> : vector<1x4xf32>
    %3 = tpu.matmul %1, %2, %cst {dimension_numbers = #tpu.dot_dimension_numbers<[1], [0], [0], [1], [0, 0, 1, 1], [], []>} : vector<1x64xf32>, vector<64x4xf32>, vector<1x4xf32> -> vector<1x4xf32>
    %c0_2 = arith.constant 0 : index
    %c0_3 = arith.constant 0 : index
    %4 = vector.load %arg4[%c0_2, %c0_3] : memref<1x4xf32, #tpu.memory_space<vmem>>, vector<1x4xf32>
    %5 = arith.addf %3, %4 : vector<1x4xf32>
    %cst_4 = arith.constant 0.000000e+00 : f32
    %6 = vector.broadcast %cst_4 : f32 to vector<1x4xf32>
    %7 = arith.maximumf %5, %6 : vector<1x4xf32>
    %c0_5 = arith.constant 0 : index
    %c0_6 = arith.constant 0 : index
    %8 = vector.load %arg5[%c0_5, %c0_6] : memref<4x128xf32, #tpu.memory_space<vmem>>, vector<4x128xf32>
    %cst_7 = arith.constant dense<0.000000e+00> : vector<1x128xf32>
    %9 = tpu.matmul %7, %8, %cst_7 {dimension_numbers = #tpu.dot_dimension_numbers<[1], [0], [0], [1], [0, 0, 1, 1], [], []>} : vector<1x4xf32>, vector<4x128xf32>, vector<1x128xf32> -> vector<1x128xf32>
    %c0_8 = arith.constant 0 : index
    %c0_9 = arith.constant 0 : index
    %10 = vector.load %arg6[%c0_8, %c0_9] : memref<1x128xf32, #tpu.memory_space<vmem>>, vector<1x128xf32>
    %11 = arith.addf %9, %10 : vector<1x128xf32>
    %c0_10 = arith.constant 0 : index
    %c0_11 = arith.constant 0 : index
    %12 = vector.load %arg7[%c0_10, %c0_11] : memref<4x128xf32, #tpu.memory_space<vmem>>, vector<4x128xf32>
    %13 = vector.broadcast %11 : vector<1x128xf32> to vector<4x128xf32>
    %14 = arith.addf %12, %13 : vector<4x128xf32>
    %15 = vector.shape_cast %14 : vector<4x128xf32> to vector<1x4x128xf32>
    %16 = vector.shape_cast %15 : vector<1x4x128xf32> to vector<1x4x128xf32>
    %17 = vector.broadcast %16 : vector<1x4x128xf32> to vector<6x4x128xf32>
    %c0_12 = arith.constant 0 : index
    %c0_13 = arith.constant 0 : index
    %c0_14 = arith.constant 0 : index
    %18 = vector.load %arg8[%c0_12, %c0_13, %c0_14] : memref<6x1x128xf32, #tpu.memory_space<vmem>>, vector<6x1x128xf32>
    %c0_15 = arith.constant 0 : index
    %c0_16 = arith.constant 0 : index
    %c0_17 = arith.constant 0 : index
    %19 = vector.load %arg9[%c0_15, %c0_16, %c0_17] : memref<6x11x128xf32, #tpu.memory_space<vmem>>, vector<6x3x128xf32>
    %20 = tpu.concatenate %18, %17, %19 in 1 : vector<6x1x128xf32>, vector<6x4x128xf32>, vector<6x3x128xf32> -> vector<6x8x128xf32>
    %c0_18 = arith.constant 0 : index
    %c0_19 = arith.constant 0 : index
    %c0_20 = arith.constant 0 : index
    %c0_21 = arith.constant 0 : index
    %21 = vector.load %arg10[%c0_18, %c0_19, %c0_20, %c0_21] : memref<1x6x16x128xf32, #tpu.memory_space<vmem>>, vector<1x6x8x128xf32>
    %22 = vector.shape_cast %21 : vector<1x6x8x128xf32> to vector<6x8x128xf32>
    %23 = vector.shape_cast %20 : vector<6x8x128xf32> to vector<1x6x8x128xf32>
    tpu.vector_store %arg10[%c0_18, %c0_19, %c0_20, %c0_21], %23 {strides = array<i32>} : memref<1x6x16x128xf32, #tpu.memory_space<vmem>>, vector<1x6x8x128xf32>,
    %c0_22 = arith.constant 0 : index
    %c3 = arith.constant 3 : index
    %c0_23 = arith.constant 0 : index
    %24 = vector.load %arg9[%c0_22, %c3, %c0_23] : memref<6x11x128xf32, #tpu.memory_space<vmem>>, vector<6x8x128xf32>
    %c0_24 = arith.constant 0 : index
    %c0_25 = arith.constant 0 : index
    %c8 = arith.constant 8 : index
    %c0_26 = arith.constant 0 : index
    %25 = vector.load %arg10[%c0_24, %c0_25, %c8, %c0_26] : memref<1x6x16x128xf32, #tpu.memory_space<vmem>>, vector<1x6x8x128xf32>
    %26 = vector.shape_cast %25 : vector<1x6x8x128xf32> to vector<6x8x128xf32>
    %27 = vector.shape_cast %24 : vector<6x8x128xf32> to vector<1x6x8x128xf32>
    tpu.vector_store %arg10[%c0_24, %c0_25, %c8, %c0_26], %27 {strides = array<i32>} : memref<1x6x16x128xf32, #tpu.memory_space<vmem>>, vector<1x6x8x128xf32>,
    return
  }
  func.func @transform_0(%arg0: i32, %arg1: i32) -> (i32, i32) {
    %c0_i32 = arith.constant 0 : i32
    %c0_i32_0 = arith.constant 0 : i32
    %c0_i32_1 = arith.constant 0 : i32
    return %c0_i32, %c0_i32_0 : i32, i32
  }
  func.func @transform_1(%arg0: i32, %arg1: i32) -> (i32, i32) {
    %c0_i32 = arith.constant 0 : i32
    %c0_i32_0 = arith.constant 0 : i32
    %c0_i32_1 = arith.constant 0 : i32
    return %c0_i32, %c0_i32_0 : i32, i32
  }
  func.func @transform_2(%arg0: i32, %arg1: i32) -> (i32, i32) {
    %c0_i32 = arith.constant 0 : i32
    %c0_i32_0 = arith.constant 0 : i32
    %c0_i32_1 = arith.constant 0 : i32
    return %c0_i32, %c0_i32_0 : i32, i32
  }
  func.func @transform_3(%arg0: i32, %arg1: i32) -> (i32, i32) {
    %c0_i32 = arith.constant 0 : i32
    %c0_i32_0 = arith.constant 0 : i32
    %c0_i32_1 = arith.constant 0 : i32
    return %c0_i32, %c0_i32_0 : i32, i32
  }
  func.func @transform_4(%arg0: i32, %arg1: i32) -> (i32, i32) {
    %c0_i32 = arith.constant 0 : i32
    %c0_i32_0 = arith.constant 0 : i32
    %c0_i32_1 = arith.constant 0 : i32
    return %c0_i32, %c0_i32_0 : i32, i32
  }
  func.func @transform_5(%arg0: i32, %arg1: i32) -> (i32, i32) {
    %c0_i32 = arith.constant 0 : i32
    %c0_i32_0 = arith.constant 0 : i32
    %c0_i32_1 = arith.constant 0 : i32
    return %c0_i32, %c0_i32_0 : i32, i32
  }
  func.func @transform_6(%arg0: i32, %arg1: i32) -> (i32, i32, i32) {
    %c0_i32 = arith.constant 0 : i32
    %c0_i32_0 = arith.constant 0 : i32
    %c0_i32_1 = arith.constant 0 : i32
    return %arg0, %c0_i32, %c0_i32_0 : i32, i32, i32
  }
  func.func @transform_7(%arg0: i32, %arg1: i32) -> (i32, i32, i32) {
    %c0_i32 = arith.constant 0 : i32
    %c0_i32_0 = arith.constant 0 : i32
    %c0_i32_1 = arith.constant 0 : i32
    return %arg0, %c0_i32, %c0_i32_0 : i32, i32, i32
  }
  func.func @transform_8(%arg0: i32, %arg1: i32) -> (i32, i32, i32, i32) {
    %c0_i32 = arith.constant 0 : i32
    %c0_i32_0 = arith.constant 0 : i32
    %c0_i32_1 = arith.constant 0 : i32
    return %arg1, %arg0, %c0_i32, %c0_i32_0 : i32, i32, i32, i32
  }
}

</mosaic_0001>

<llo_original>
// kernel: tpu_custom_call.1
$region0: #{tpu_custom_call.1}
  #allocation0 [shape = 'u32[]', space=smem, size = 0x4, offset = 0x4, fixed_abs, tag = 'smem constant byte address 0x4 - core index']
  #allocation1 [shape = 'u32[144,128]{1,0:T(1,128)}', space=vmem, size = 0x12000, scoped, tag = 'internal scratch']
  %s0 = inlined_call_operand.vmem [shape: f32[2,64], index: 0, kind: input, shape index: {}]
  %s1 = inlined_call_operand.vmem [shape: f32[64,4], index: 1, kind: input, shape index: {}]
  %s2 = inlined_call_operand.vmem [shape: f32[1,4], index: 2, kind: input, shape index: {}]
  %s3 = inlined_call_operand.vmem [shape: f32[4,128], index: 3, kind: input, shape index: {}]
  %s4 = inlined_call_operand.vmem [shape: f32[1,128], index: 4, kind: input, shape index: {}]
  %s5 = inlined_call_operand.vmem [shape: f32[4,128], index: 5, kind: input, shape index: {}]
  %s6 = inlined_call_operand.vmem [shape: f32[6,1,128], index: 6, kind: input, shape index: {}]
  %s7 = inlined_call_operand.vmem [shape: f32[6,11,128], index: 7, kind: input, shape index: {}]
  %s8 = inlined_call_operand.hbm [shape: f32[2,6,16,128], index: 8, kind: output, shape index: {}]
  %s9 = sld [smem:[#allocation0]]
  $region65: #{tpu_custom_call.1} parent=0
    _
  %s11 = ssub.s32 1, %s9
  %s12 = scalar_select 0, %s11, %s9
  $region1: #{tpu_custom_call.1} parent=0
    #allocation2 [shape = 'u8[98304]{0}', space=vmem, size = 0x18000, scoped, tag = 'output window, operand 0']
    #allocation3 [shape = 's32[2]{0}', space=sflag, size = 0x8, scoped, tag = 'scoped memory for tpu_custom_call.1']
    %13 = vsyncpa [#allocation3], 0
    %s14 = scalar_lea.sflag [#allocation3], 1
    %15 = vsyncpa %s14, 0
    loop: start=0, step=1, limit=4
    $region2: #{tpu_custom_call.1} parent=1 // loop_pre_header
      _
    $region3: #{tpu_custom_call.1} parent=1 // loop_header
      %s17 = sphi 0, %s21
      %p18 = scmp.ge.s32.totalorder %s17, 4
      %s24 = sphi 0, %s36
      %s25 = sphi 0, %s32
      %s26 = sphi 0, %s24
      %s27 = sphi 0, %s25
      %s28 = sphi 0, %s26
      %s29 = sphi 0, %s27
      %s37 = sphi 0, %s37
      %s39 = sphi 0, %s37
      %s40 = sphi 0, %s39
      %s54 = sphi 0, %s40
      %s58 = sphi 0, %s58
      %s60 = sphi 0, %s58
      %s61 = sphi 0, %s60
      %s75 = sphi 0, %s61
      %s79 = sphi 0, %s79
      %s81 = sphi 0, %s79
      %s82 = sphi 0, %s81
      %s96 = sphi 0, %s82
      %s100 = sphi 0, %s100
      %s102 = sphi 0, %s100
      %s103 = sphi 0, %s102
      %s117 = sphi 0, %s103
      %s121 = sphi 0, %s121
      %s123 = sphi 0, %s121
      %s124 = sphi 0, %s123
      %s138 = sphi 0, %s124
      %s142 = sphi 0, %s142
      %s144 = sphi 0, %s142
      %s145 = sphi 0, %s144
      %s159 = sphi 0, %s145
      %s165 = sphi 0, %s167
      %s168 = sphi 0, %s165
      %s169 = sphi 0, %s168
      %s185 = sphi 0, %s169
      %s191 = sphi 0, %s193
      %s194 = sphi 0, %s191
      %s195 = sphi 0, %s194
      %s211 = sphi 0, %s195
      %s219 = sphi 0, %s221
      %s222 = sphi 0, %s219
      %s223 = sphi 0, %s222
      %s239 = sphi 0, %s223
    $region4: #{tpu_custom_call.1} parent=1 // loop_header_branch
      %20 = sbr.rel (%p18) target = $region8
    $region5: #{tpu_custom_call.1} parent=1 // loop_body
      %s22 = ssub.s32 %s17, 1
      %s23 = ssub.s32 %s17, 2
      %s30 = sadd.s32 1, %s25
      %p31 = scmp.ge.s32.totalorder %s30, 2
      %s32 = scalar_select %p31, 0, %s30
      %s33 = sadd.s32 1, %s24
      %s34 = scalar_select %p31, %s33, %s24
      %p35 = scmp.ge.s32.totalorder %s34, 1
      %s36 = scalar_select %p35, 0, %s34
      %s38 = sadd.s32 %s37, 1
      %p41 = scmp.eq.s32.totalorder %s17, 1
      %p42 = scmp.ne.s32.totalorder %s37, %s39
      %p43 = scmp.eq.s32.totalorder %s17, 0
      %p44 = por %p42, %p43
      %p45 = scmp.ne.s32.totalorder %s37, %s39
      %p46 = scmp.eq.s32.totalorder %s22, 1
      %p47 = por %p45, %p46
      %p48 = scmp.ne.s32.totalorder %s39, %s40
      %p49 = scmp.eq.s32.totalorder %s22, 0
      %p50 = por %p48, %p49
      %p51 = scmp.ne.s32.totalorder %s39, %s40
      %p52 = scmp.eq.s32.totalorder %s23, 1
      %p53 = por %p51, %p52
      %p55 = scmp.ne.s32.totalorder %s40, %s54
      %p56 = scmp.eq.s32.totalorder %s23, 0
      %p57 = por %p55, %p56
      %s59 = sadd.s32 %s58, 1
      %p62 = scmp.eq.s32.totalorder %s17, 1
      %p63 = scmp.ne.s32.totalorder %s58, %s60
      %p64 = scmp.eq.s32.totalorder %s17, 0
      %p65 = por %p63, %p64
      %p66 = scmp.ne.s32.totalorder %s58, %s60
      %p67 = scmp.eq.s32.totalorder %s22, 1
      %p68 = por %p66, %p67
      %p69 = scmp.ne.s32.totalorder %s60, %s61
      %p70 = scmp.eq.s32.totalorder %s22, 0
      %p71 = por %p69, %p70
      %p72 = scmp.ne.s32.totalorder %s60, %s61
      %p73 = scmp.eq.s32.totalorder %s23, 1
      %p74 = por %p72, %p73
      %p76 = scmp.ne.s32.totalorder %s61, %s75
      %p77 = scmp.eq.s32.totalorder %s23, 0
      %p78 = por %p76, %p77
      %s80 = sadd.s32 %s79, 1
      %p83 = scmp.eq.s32.totalorder %s17, 1
      %p84 = scmp.ne.s32.totalorder %s79, %s81
      %p85 = scmp.eq.s32.totalorder %s17, 0
      %p86 = por %p84, %p85
      %p87 = scmp.ne.s32.totalorder %s79, %s81
      %p88 = scmp.eq.s32.totalorder %s22, 1
      %p89 = por %p87, %p88
      %p90 = scmp.ne.s32.totalorder %s81, %s82
      %p91 = scmp.eq.s32.totalorder %s22, 0
      %p92 = por %p90, %p91
      %p93 = scmp.ne.s32.totalorder %s81, %s82
      %p94 = scmp.eq.s32.totalorder %s23, 1
      %p95 = por %p93, %p94
      %p97 = scmp.ne.s32.totalorder %s82, %s96
      %p98 = scmp.eq.s32.totalorder %s23, 0
      %p99 = por %p97, %p98
      %s101 = sadd.s32 %s100, 1
      %p104 = scmp.eq.s32.totalorder %s17, 1
      %p105 = scmp.ne.s32.totalorder %s100, %s102
      %p106 = scmp.eq.s32.totalorder %s17, 0
      %p107 = por %p105, %p106
      %p108 = scmp.ne.s32.totalorder %s100, %s102
      %p109 = scmp.eq.s32.totalorder %s22, 1
      %p110 = por %p108, %p109
      %p111 = scmp.ne.s32.totalorder %s102, %s103
      %p112 = scmp.eq.s32.totalorder %s22, 0
      %p113 = por %p111, %p112
      %p114 = scmp.ne.s32.totalorder %s102, %s103
      %p115 = scmp.eq.s32.totalorder %s23, 1
      %p116 = por %p114, %p115
      %p118 = scmp.ne.s32.totalorder %s103, %s117
      %p119 = scmp.eq.s32.totalorder %s23, 0
      %p120 = por %p118, %p119
      %s122 = sadd.s32 %s121, 1
      %p125 = scmp.eq.s32.totalorder %s17, 1
      %p126 = scmp.ne.s32.totalorder %s121, %s123
      %p127 = scmp.eq.s32.totalorder %s17, 0
      %p128 = por %p126, %p127
      %p129 = scmp.ne.s32.totalorder %s121, %s123
      %p130 = scmp.eq.s32.totalorder %s22, 1
      %p131 = por %p129, %p130
      %p132 = scmp.ne.s32.totalorder %s123, %s124
      %p133 = scmp.eq.s32.totalorder %s22, 0
      %p134 = por %p132, %p133
      %p135 = scmp.ne.s32.totalorder %s123, %s124
      %p136 = scmp.eq.s32.totalorder %s23, 1
      %p137 = por %p135, %p136
      %p139 = scmp.ne.s32.totalorder %s124, %s138
      %p140 = scmp.eq.s32.totalorder %s23, 0
      %p141 = por %p139, %p140
      %s143 = sadd.s32 %s142, 1
      %p146 = scmp.eq.s32.totalorder %s17, 1
      %p147 = scmp.ne.s32.totalorder %s142, %s144
      %p148 = scmp.eq.s32.totalorder %s17, 0
      %p149 = por %p147, %p148
      %p150 = scmp.ne.s32.totalorder %s142, %s144
      %p151 = scmp.eq.s32.totalorder %s22, 1
      %p152 = por %p150, %p151
      %p153 = scmp.ne.s32.totalorder %s144, %s145
      %p154 = scmp.eq.s32.totalorder %s22, 0
      %p155 = por %p153, %p154
      %p156 = scmp.ne.s32.totalorder %s144, %s145
      %p157 = scmp.eq.s32.totalorder %s23, 1
      %p158 = por %p156, %p157
      %p160 = scmp.ne.s32.totalorder %s145, %s159
      %p161 = scmp.eq.s32.totalorder %s23, 0
      %p162 = por %p160, %p161
      %s163 = ssub.s32 %s24, %s36
      %p164 = scmp.eq.s32.totalorder %s163, 0
      %s166 = sadd.s32 %s165, 1
      %s167 = scalar_select %p164, %s165, %s166
      %p170 = pneg %p164
      %p171 = scmp.eq.s32.totalorder %s17, 1
      %p172 = por %p170, %p171
      %p173 = scmp.ne.s32.totalorder %s165, %s168
      %p174 = scmp.eq.s32.totalorder %s17, 0
      %p175 = por %p173, %p174
      %p176 = scmp.ne.s32.totalorder %s165, %s168
      %p177 = scmp.eq.s32.totalorder %s22, 1
      %p178 = por %p176, %p177
      %p179 = scmp.ne.s32.totalorder %s168, %s169
      %p180 = scmp.eq.s32.totalorder %s22, 0
      %p181 = por %p179, %p180
      %p182 = scmp.ne.s32.totalorder %s168, %s169
      %p183 = scmp.eq.s32.totalorder %s23, 1
      %p184 = por %p182, %p183
      %p186 = scmp.ne.s32.totalorder %s169, %s185
      %p187 = scmp.eq.s32.totalorder %s23, 0
      %p188 = por %p186, %p187
      %s189 = ssub.s32 %s24, %s36
      %p190 = scmp.eq.s32.totalorder %s189, 0
      %s192 = sadd.s32 %s191, 1
      %s193 = scalar_select %p190, %s191, %s192
      %p196 = pneg %p190
      %p197 = scmp.eq.s32.totalorder %s17, 1
      %p198 = por %p196, %p197
      %p199 = scmp.ne.s32.totalorder %s191, %s194
      %p200 = scmp.eq.s32.totalorder %s17, 0
      %p201 = por %p199, %p200
      %p202 = scmp.ne.s32.totalorder %s191, %s194
      %p203 = scmp.eq.s32.totalorder %s22, 1
      %p204 = por %p202, %p203
      %p205 = scmp.ne.s32.totalorder %s194, %s195
      %p206 = scmp.eq.s32.totalorder %s22, 0
      %p207 = por %p205, %p206
      %p208 = scmp.ne.s32.totalorder %s194, %s195
      %p209 = scmp.eq.s32.totalorder %s23, 1
      %p210 = por %p208, %p209
      %p212 = scmp.ne.s32.totalorder %s195, %s211
      %p213 = scmp.eq.s32.totalorder %s23, 0
      %p214 = por %p212, %p213
      %s215 = ssub.s32 %s25, %s32
      %s216 = ssub.s32 %s24, %s36
      %s217 = sor.u32 %s215, %s216
      %p218 = scmp.eq.s32.totalorder %s217, 0
      %s220 = sadd.s32 %s219, 1
      %s221 = scalar_select %p218, %s219, %s220
      %p224 = pneg %p218
      %p225 = scmp.eq.s32.totalorder %s17, 1
      %p226 = por %p224, %p225
      %p227 = scmp.ne.s32.totalorder %s219, %s222
      %p228 = scmp.eq.s32.totalorder %s17, 0
      %p229 = por %p227, %p228
      %p230 = scmp.ne.s32.totalorder %s219, %s222
      %p231 = scmp.eq.s32.totalorder %s22, 1
      %p232 = por %p230, %p231
      %p233 = scmp.ne.s32.totalorder %s222, %s223
      %p234 = scmp.eq.s32.totalorder %s22, 0
      %p235 = por %p233, %p234
      %p236 = scmp.ne.s32.totalorder %s222, %s223
      %p237 = scmp.eq.s32.totalorder %s23, 1
      %p238 = por %p236, %p237
      %p240 = scmp.ne.s32.totalorder %s223, %s239
      %p241 = scmp.eq.s32.totalorder %s23, 0
      %p242 = por %p240, %p241
      %p243 = scmp.le.s32.totalorder 1, %s17
      %p244 = scmp.lt.s32.totalorder %s17, 3
      %p245 = pnand %p243, %p244
      %p246 = pneg %p245
      // Predicated region
      $region9: #{tpu_custom_call.1} parent=5 // pred_check
        _
      $region10: #{tpu_custom_call.1} parent=5 // pred_check_branch
        %248 = sbr.rel (%p245) target = $region12
      $region11: #{tpu_custom_call.1} parent=5 // pred_region
        %s249 = ssub.s32 %s17, 1
        // Predicated region
        $region13: #{tpu_custom_call.1} parent=11 // pred_check
          %p250 = pneg %p50
        $region14: #{tpu_custom_call.1} parent=11 // pred_check_branch
          %252 = sbr.rel (%p250) target = $region16
        $region15: #{tpu_custom_call.1} parent=11 // pred_region
          _
        $region16: #{tpu_custom_call.1} parent=11 // pred_fallthru
          _
        // Predicated region
        $region17: #{tpu_custom_call.1} parent=11 // pred_check
          %p253 = pneg %p71
        $region18: #{tpu_custom_call.1} parent=11 // pred_check_branch
          %255 = sbr.rel (%p253) target = $region20
        $region19: #{tpu_custom_call.1} parent=11 // pred_region
          _
        $region20: #{tpu_custom_call.1} parent=11 // pred_fallthru
          _
        // Predicated region
        $region21: #{tpu_custom_call.1} parent=11 // pred_check
          %p256 = pneg %p92
        $region22: #{tpu_custom_call.1} parent=11 // pred_check_branch
          %258 = sbr.rel (%p256) target = $region24
        $region23: #{tpu_custom_call.1} parent=11 // pred_region
          _
        $region24: #{tpu_custom_call.1} parent=11 // pred_fallthru
          _
        // Predicated region
        $region25: #{tpu_custom_call.1} parent=11 // pred_check
          %p259 = pneg %p113
        $region26: #{tpu_custom_call.1} parent=11 // pred_check_branch
          %261 = sbr.rel (%p259) target = $region28
        $region27: #{tpu_custom_call.1} parent=11 // pred_region
          _
        $region28: #{tpu_custom_call.1} parent=11 // pred_fallthru
          _
        // Predicated region
        $region29: #{tpu_custom_call.1} parent=11 // pred_check
          %p262 = pneg %p134
        $region30: #{tpu_custom_call.1} parent=11 // pred_check_branch
          %264 = sbr.rel (%p262) target = $region32
        $region31: #{tpu_custom_call.1} parent=11 // pred_region
          _
        $region32: #{tpu_custom_call.1} parent=11 // pred_fallthru
          _
        // Predicated region
        $region33: #{tpu_custom_call.1} parent=11 // pred_check
          %p265 = pneg %p155
        $region34: #{tpu_custom_call.1} parent=11 // pred_check_branch
          %267 = sbr.rel (%p265) target = $region36
        $region35: #{tpu_custom_call.1} parent=11 // pred_region
          _
        $region36: #{tpu_custom_call.1} parent=11 // pred_fallthru
          _
        // Predicated region
        $region37: #{tpu_custom_call.1} parent=11 // pred_check
          %p268 = pneg %p181
        $region38: #{tpu_custom_call.1} parent=11 // pred_check_branch
          %270 = sbr.rel (%p268) target = $region40
        $region39: #{tpu_custom_call.1} parent=11 // pred_region
          %s271 = smul.u32 6, %s26
          %p272 = scmp.lt.s32.totalorder %s271, 5
          %s273 = scalar_select %p272, %s271, 5
          %s274 = scalar_lea.vmem %s6, %s273
          %s275 = smul.u32 6, %s26
        $region40: #{tpu_custom_call.1} parent=11 // pred_fallthru
          _
        // Predicated region
        $region41: #{tpu_custom_call.1} parent=11 // pred_check
          %p276 = pneg %p207
        $region42: #{tpu_custom_call.1} parent=11 // pred_check_branch
          %278 = sbr.rel (%p276) target = $region44
        $region43: #{tpu_custom_call.1} parent=11 // pred_region
          %s279 = smul.u32 6, %s26
          %p280 = scmp.lt.s32.totalorder %s279, 5
          %s281 = scalar_select %p280, %s279, 5
          %s282 = smul.addr %s281, 2
          %s283 = smul.addr %s282, 8
          %s284 = scalar_lea.vmem %s7, %s283
          %s285 = smul.u32 6, %s26
        $region44: #{tpu_custom_call.1} parent=11 // pred_fallthru
          _
      $region12: #{tpu_custom_call.1} parent=5 // pred_fallthru
        _
      %p286 = scmp.lt.s32.totalorder %s17, 2
      // Predicated region
      $region45: #{tpu_custom_call.1} parent=5 // pred_check
        %p287 = pneg %p286
      $region46: #{tpu_custom_call.1} parent=5 // pred_check_branch
        %289 = sbr.rel (%p287) target = $region48
      $region47: #{tpu_custom_call.1} parent=5 // pred_region
        _
      $region48: #{tpu_custom_call.1} parent=5 // pred_fallthru
        _
      %p290 = scmp.le.s32.totalorder 1, %s17
      %p291 = scmp.lt.s32.totalorder %s17, 3
      %p292 = pnand %p290, %p291
      %p293 = pneg %p292
      // Predicated region
      $region49: #{tpu_custom_call.1} parent=5 // pred_check
        _
      $region50: #{tpu_custom_call.1} parent=5 // pred_check_branch
        %295 = sbr.rel (%p292) target = $region52
      $region51: #{tpu_custom_call.1} parent=5 // pred_region
        %s296 = ssub.s32 %s17, 1
        %p297 = pneg %p50
        %p298 = pneg %p47
        %p299 = pneg %p71
        %p300 = pneg %p68
        %p301 = pneg %p92
        %p302 = pneg %p89
        %p303 = pneg %p113
        %p304 = pneg %p110
        %p305 = pneg %p134
        %p306 = pneg %p131
        %p307 = pneg %p155
        %p308 = pneg %p152
        %s309 = smul.u32 6, %s26
        %p310 = scmp.lt.s32.totalorder %s309, 5
        %s311 = scalar_select %p310, %s309, 5
        %s312 = scalar_lea.vmem %s6, %s311
        %p313 = pneg %p181
        %p314 = pneg %p178
        %s315 = smul.u32 6, %s26
        %p316 = scmp.lt.s32.totalorder %s315, 5
        %s317 = scalar_select %p316, %s315, 5
        %s318 = smul.addr %s317, 2
        %s319 = smul.addr %s318, 8
        %s320 = scalar_lea.vmem %s7, %s319
        %p321 = pneg %p207
        %p322 = pneg %p204
        %p323 = pneg %p235
        %p324 = pneg %p232
        %s325 = sand.u32 %s222, 1
        %s326 = scalar_lea.sflag [#allocation3], %s325
        %s327 = sand.u32 %s222, 1
        %s328 = smul.addr %s327, 96
        %s329 = scalar_lea.vmem [#allocation2], %s328
        %s330 = smul.u32 6, %s26
        %p331 = scmp.lt.s32.totalorder %s330, 5
        %s332 = scalar_select %p331, %s330, 5
        %s333 = scalar_lea.vmem %s6, %s332
        %s334 = smul.u32 6, %s26
        %s335 = smul.u32 6, %s26
        %p336 = scmp.lt.s32.totalorder %s335, 5
        %s337 = scalar_select %p336, %s335, 5
        %s338 = smul.addr %s337, 2
        %s339 = smul.addr %s338, 8
        %s340 = scalar_lea.vmem %s7, %s339
        %s341 = smul.u32 6, %s26
        %s342 = smul.u32 6, %s26
        %s343 = scalar_lea.vmem %s0, %s27
        %v344 = vld [vmem:[%s343] sm:$0x1]
        %v345 = vld [vmem:[%s1] sm:$0xff]
        %v346 = vld [vmem:[%s1 + $0x8] sm:$0xff]
        %v347 = vld [vmem:[%s1 + $0x10] sm:$0xff]
        %v348 = vld [vmem:[%s1 + $0x18] sm:$0xff]
        %v349 = vld [vmem:[%s1 + $0x20] sm:$0xff]
        %v350 = vld [vmem:[%s1 + $0x28] sm:$0xff]
        %v351 = vld [vmem:[%s1 + $0x30] sm:$0xff]
        %v352 = vld [vmem:[%s1 + $0x38] sm:$0xff]
        %v353 = vld [vmem:[%s2] sm:$0x1]
        %vm354 = vcmask 523264
        %v356 = vsel %vm354, %v344, 0
        %358 = vmatprep.subr.mxu0 0.0
        %359 = vmatpush1.msra.mxu0 0.0
        %360 = vmatprep.subr.mxu0 0.0
        %361 = vmatpush1.msra.mxu0 0.0
        %362 = vmatprep.subr.mxu0 0.0
        %363 = vmatpush1.msra.mxu0 0.0
        %364 = vmatprep.subr.mxu0 0.0
        %365 = vmatpush1.msra.mxu0 0.0
        %366 = vmatprep.subr.mxu0 0.0
        %367 = vmatpush1.msra.mxu0 0.0
        %368 = vmatprep.subr.mxu0 0.0
        %369 = vmatpush1.msra.mxu0 0.0
        %370 = vmatprep.subr.mxu0 0.0
        %371 = vmatpush1.msra.mxu0 0.0
        %372 = vmatprep.subr.mxu0 0.0
        %373 = vmatpush1.msra.mxu0 0.0
        %374 = vmatprep.subr.mxu0 0.0
        %375 = vmatpush1.msra.mxu0 %v352
        %376 = vmatprep.subr.mxu0 0.0
        %377 = vmatpush1.msra.mxu0 %v351
        %378 = vmatprep.subr.mxu0 0.0
        %379 = vmatpush1.msra.mxu0 %v350
        %380 = vmatprep.subr.mxu0 0.0
        %381 = vmatpush1.msra.mxu0 %v349
        %382 = vmatprep.subr.mxu0 0.0
        %383 = vmatpush1.msra.mxu0 %v348
        %384 = vmatprep.subr.mxu0 0.0
        %385 = vmatpush1.msra.mxu0 %v347
        %386 = vmatprep.subr.mxu0 0.0
        %387 = vmatpush1.msra.mxu0 %v346
        %388 = vmatprep.subr.mxu0 0.0
        %389 = vmatpush1.msra.mxu0 %v345
        %390 = vmatprep.subr.mxu0 0.0
        %391 = vmatpush2.msra.mxu0 0.0
        %392 = vmatprep.subr.mxu0 0.0
        %393 = vmatpush2.msra.mxu0 0.0
        %394 = vmatprep.subr.mxu0 0.0
        %395 = vmatpush2.msra.mxu0 0.0
        %396 = vmatprep.subr.mxu0 0.0
        %397 = vmatpush2.msra.mxu0 0.0
        %398 = vmatprep.subr.mxu0 0.0
        %399 = vmatpush2.msra.mxu0 0.0
        %400 = vmatprep.subr.mxu0 0.0
        %401 = vmatpush2.msra.mxu0 0.0
        %402 = vmatprep.subr.mxu0 0.0
        %403 = vmatpush2.msra.mxu0 0.0
        %404 = vmatprep.subr.mxu0 0.0
        %405 = vmatpush2.msra.mxu0 0.0
        %406 = vmatprep.subr.mxu0 0.0
        %407 = vmatpush2.msra.mxu0 0.0
        %408 = vmatprep.subr.mxu0 0.0
        %409 = vmatpush2.msra.mxu0 0.0
        %410 = vmatprep.subr.mxu0 0.0
        %411 = vmatpush2.msra.mxu0 0.0
        %412 = vmatprep.subr.mxu0 0.0
        %413 = vmatpush2.msra.mxu0 0.0
        %414 = vmatprep.subr.mxu0 0.0
        %415 = vmatpush2.msra.mxu0 0.0
        %416 = vmatprep.subr.mxu0 0.0
        %417 = vmatpush2.msra.mxu0 0.0
        %418 = vmatprep.subr.mxu0 0.0
        %419 = vmatpush2.msra.mxu0 0.0
        %420 = vmatprep.subr.mxu0 0.0
        %421 = vmatpush2.msra.mxu0 0.0
        %422 = vmatprep.mubr.f32.mxu0 0.0
        %423 = vmatmul.mubr.f32.gmra.mxu0 %v356
        %v424 = vpop.f32.mrf.mxu0
        %v425 = vadd.f32 %v353, %v424
        %v426 = vpop.f32.mrf.mxu0
        %427 = vdwg.mxu0
        %v428 = vmax.f32 %v425, 0.0
        %v429 = vld [vmem:[%s3] sm:$0xf]
        %v430 = vld [vmem:[%s4] sm:$0x1]
        %vm431 = vcmask 31744
        %v433 = vsel %vm431, %v428, 0
        %vm435 = vcmask 1043456
        %v437 = vsel %vm435, %v429, 0
        %439 = vmatprep.subr.mxu0 0.0
        %440 = vmatpush1.msra.mxu0 0.0
        %441 = vmatprep.subr.mxu0 0.0
        %442 = vmatpush1.msra.mxu0 0.0
        %443 = vmatprep.subr.mxu0 0.0
        %444 = vmatpush1.msra.mxu0 0.0
        %445 = vmatprep.subr.mxu0 0.0
        %446 = vmatpush1.msra.mxu0 0.0
        %447 = vmatprep.subr.mxu0 0.0
        %448 = vmatpush1.msra.mxu0 0.0
        %449 = vmatprep.subr.mxu0 0.0
        %450 = vmatpush1.msra.mxu0 0.0
        %451 = vmatprep.subr.mxu0 0.0
        %452 = vmatpush1.msra.mxu0 0.0
        %453 = vmatprep.subr.mxu0 0.0
        %454 = vmatpush1.msra.mxu0 0.0
        %455 = vmatprep.subr.mxu0 0.0
        %456 = vmatpush1.msra.mxu0 0.0
        %457 = vmatprep.subr.mxu0 0.0
        %458 = vmatpush1.msra.mxu0 0.0
        %459 = vmatprep.subr.mxu0 0.0
        %460 = vmatpush1.msra.mxu0 0.0
        %461 = vmatprep.subr.mxu0 0.0
        %462 = vmatpush1.msra.mxu0 0.0
        %463 = vmatprep.subr.mxu0 0.0
        %464 = vmatpush1.msra.mxu0 0.0
        %465 = vmatprep.subr.mxu0 0.0
        %466 = vmatpush1.msra.mxu0 0.0
        %467 = vmatprep.subr.mxu0 0.0
        %468 = vmatpush1.msra.mxu0 0.0
        %469 = vmatprep.subr.mxu0 0.0
        %470 = vmatpush1.msra.mxu0 %v437
        %471 = vmatprep.subr.mxu0 0.0
        %472 = vmatpush2.msra.mxu0 0.0
        %473 = vmatprep.subr.mxu0 0.0
        %474 = vmatpush2.msra.mxu0 0.0
        %475 = vmatprep.subr.mxu0 0.0
        %476 = vmatpush2.msra.mxu0 0.0
        %477 = vmatprep.subr.mxu0 0.0
        %478 = vmatpush2.msra.mxu0 0.0
        %479 = vmatprep.subr.mxu0 0.0
        %480 = vmatpush2.msra.mxu0 0.0
        %481 = vmatprep.subr.mxu0 0.0
        %482 = vmatpush2.msra.mxu0 0.0
        %483 = vmatprep.subr.mxu0 0.0
        %484 = vmatpush2.msra.mxu0 0.0
        %485 = vmatprep.subr.mxu0 0.0
        %486 = vmatpush2.msra.mxu0 0.0
        %487 = vmatprep.subr.mxu0 0.0
        %488 = vmatpush2.msra.mxu0 0.0
        %489 = vmatprep.subr.mxu0 0.0
        %490 = vmatpush2.msra.mxu0 0.0
        %491 = vmatprep.subr.mxu0 0.0
        %492 = vmatpush2.msra.mxu0 0.0
        %493 = vmatprep.subr.mxu0 0.0
        %494 = vmatpush2.msra.mxu0 0.0
        %495 = vmatprep.subr.mxu0 0.0
        %496 = vmatpush2.msra.mxu0 0.0
        %497 = vmatprep.subr.mxu0 0.0
        %498 = vmatpush2.msra.mxu0 0.0
        %499 = vmatprep.subr.mxu0 0.0
        %500 = vmatpush2.msra.mxu0 0.0
        %501 = vmatprep.subr.mxu0 0.0
        %502 = vmatpush2.msra.mxu0 0.0
        %503 = vmatprep.mubr.f32.mxu0 0.0
        %504 = vmatmul.mubr.f32.gmra.mxu0 %v433
        %v505 = vpop.f32.mrf.mxu0
        %v506 = vadd.f32 %v430, %v505
        %v507 = vpop.f32.mrf.mxu0
        %508 = vdwg.mxu0
        %v509 = vld [vmem:[%s5] sm:$0xf]
        %v510 = vlaneseq
        %v511 = vshrl.u32 %v510, 7
        %v512 = vsub.s32 0, %v511
        %v513 = vrot.slane %v506, %v512
        %v514 = vadd.f32 %v509, %v513
        %v515 = vld [vmem:[%s333] sm:$0x1]
        %v516 = vld [vmem:[%s333 + $0x1] sm:$0x1]
        %v517 = vld [vmem:[%s333 + $0x2] sm:$0x1]
        %v518 = vld [vmem:[%s333 + $0x3] sm:$0x1]
        %v519 = vld [vmem:[%s333 + $0x4] sm:$0x1]
        %v520 = vld [vmem:[%s333 + $0x5] sm:$0x1]
        %v521 = vld [vmem:[%s340] sm:$0x7]
        %v522 = vld [vmem:[%s340 + $0x10] sm:$0x7]
        %v523 = vld [vmem:[%s340 + $0x20] sm:$0x7]
        %v524 = vld [vmem:[%s340 + $0x30] sm:$0x7]
        %v525 = vld [vmem:[%s340 + $0x40] sm:$0x7]
        %v526 = vld [vmem:[%s340 + $0x50] sm:$0x7]
        %v528 = vrot.slane %v514, 7
        %v536 = vrot.slane %v521, 3
        %v537 = vrot.slane %v522, 3
        %v538 = vrot.slane %v523, 3
        %v539 = vrot.slane %v524, 3
        %v540 = vrot.slane %v525, 3
        %v541 = vrot.slane %v526, 3
        %vm548 = vcmask 1040384
        %v549 = vsel %vm548, %v515, %v528
        %v550 = vsel %vm548, %v516, %v528
        %v551 = vsel %vm548, %v517, %v528
        %v552 = vsel %vm548, %v518, %v528
        %v553 = vsel %vm548, %v519, %v528
        %v554 = vsel %vm548, %v520, %v528
        %vm555 = vcmask 1044480
        %v556 = vsel %vm555, %v549, %v536
        %v557 = vsel %vm555, %v550, %v537
        %v558 = vsel %vm555, %v551, %v538
        %v559 = vsel %vm555, %v552, %v539
        %v560 = vsel %vm555, %v553, %v540
        %v561 = vsel %vm555, %v554, %v541
        %562 = vst [vmem:[%s329] sm:$0xff] %v556
        %563 = vst [vmem:[%s329 + $0x10] sm:$0xff] %v557
        %564 = vst [vmem:[%s329 + $0x20] sm:$0xff] %v558
        %565 = vst [vmem:[%s329 + $0x30] sm:$0xff] %v559
        %566 = vst [vmem:[%s329 + $0x40] sm:$0xff] %v560
        %567 = vst [vmem:[%s329 + $0x50] sm:$0xff] %v561
        %v568 = vld [vmem:[%s340 + $0x3] sm:$0xff]
        %v569 = vld [vmem:[%s340 + $0x13] sm:$0xff]
        %v570 = vld [vmem:[%s340 + $0x23] sm:$0xff]
        %v571 = vld [vmem:[%s340 + $0x33] sm:$0xff]
        %v572 = vld [vmem:[%s340 + $0x43] sm:$0xff]
        %v573 = vld [vmem:[%s340 + $0x53] sm:$0xff]
        %574 = vst [vmem:[%s329 + $0x8] sm:$0xff] %v568
        %575 = vst [vmem:[%s329 + $0x18] sm:$0xff] %v569
        %576 = vst [vmem:[%s329 + $0x28] sm:$0xff] %v570
        %577 = vst [vmem:[%s329 + $0x38] sm:$0xff] %v571
        %578 = vst [vmem:[%s329 + $0x48] sm:$0xff] %v572
        %579 = vst [vmem:[%s329 + $0x58] sm:$0xff] %v573
        %s580 = sand.u32 %s222, 1
        %s581 = scalar_lea.sflag [#allocation3], %s580
        %s582 = sand.u32 %s222, 1
        %s583 = smul.addr %s582, 96
        %s584 = scalar_lea.vmem [#allocation2], %s583
        // Predicated region
        $region53: #{tpu_custom_call.1} parent=51 // pred_check
          %p585 = pneg %p232
        $region54: #{tpu_custom_call.1} parent=51 // pred_check_branch
          %587 = sbr.rel (%p585) target = $region56
        $region55: #{tpu_custom_call.1} parent=51 // pred_region
          %s588 = smul.u32 6, %s26
          %s590 = ssub.s32 1536, 1536
          %591 = vsyncadd %s581, %s590
          %s592 = smul.addr %s588, 2
          %s593 = smul.addr %s27, 12
          %s594 = sadd.s32 %s592, %s593
          %s595 = smul.addr %s594, 128
          %s596 = scalar_lea.hbm %s8, %s595
          %s597 = sshll.u32 %s584, 4
          %s598 = int_to_ptr.vmem [resolvable:$true] %s597
          %603 = dma.vmem_to_hbm [thread:$0]  %s598, 1536, %s596, %s581, 128, 128, 8
        $region56: #{tpu_custom_call.1} parent=51 // pred_fallthru
          _
      $region52: #{tpu_custom_call.1} parent=5 // pred_fallthru
        _
      %p604 = scmp.le.s32.totalorder 2, %s17
      // Predicated region
      $region57: #{tpu_custom_call.1} parent=5 // pred_check
        %p605 = pneg %p604
      $region58: #{tpu_custom_call.1} parent=5 // pred_check_branch
        %607 = sbr.rel (%p605) target = $region60
      $region59: #{tpu_custom_call.1} parent=5 // pred_region
        %s608 = ssub.s32 %s17, 2
        // Predicated region
        $region61: #{tpu_custom_call.1} parent=59 // pred_check
          %p609 = pneg %p238
        $region62: #{tpu_custom_call.1} parent=59 // pred_check_branch
          %611 = sbr.rel (%p609) target = $region64
        $region63: #{tpu_custom_call.1} parent=59 // pred_region
          %s612 = sand.u32 %s223, 1
          %s613 = scalar_lea.sflag [#allocation3], %s612
          %s614 = sand.u32 %s223, 1
          %s615 = smul.addr %s614, 96
          %s616 = scalar_lea.vmem [#allocation2], %s615
          %617 = dma.done %s613, 1536
        $region64: #{tpu_custom_call.1} parent=59 // pred_fallthru
          _
      $region60: #{tpu_custom_call.1} parent=5 // pred_fallthru
        _
    $region6: #{tpu_custom_call.1} parent=1 // loop_footer
      %s21 = sadd.s32 1, %s17
    $region7: #{tpu_custom_call.1} parent=1 // loop_footer_branch
      %16 = sbr.rel target = $region3
    $region8: #{tpu_custom_call.1} parent=1 // loop_exit
      _
    %618 = vsyncpa [#allocation3], 1
    %s619 = scalar_lea.sflag [#allocation3], 1
    %620 = vsyncpa %s619, 1

</llo_original>
